<compile_context>
chip_gen: v7x
topology: tpu7x:2x2x1
jax: 0.10.0
libtpu: 0.0.40
codegen_flags: <defaults>
</compile_context>

<pallas_src>
import jax
import jax.numpy as jnp
from jax import lax
from jax.experimental import pallas as pl
from jax.experimental.pallas import tpu as pltpu


def _make_kernel(cost, alpha, beta, num_classes, batch, tile_b):
    """Returns a kernel closure with the hyperparameters baked in."""
    needs_mask = (batch % tile_b) != 0
    inv_b = 1.0 / float(batch)
    half_alpha = alpha * 0.5
    a_scale = alpha / (2.0 * float(num_classes))

    def kernel(pred_ref, rej_ref, tgt_ref, loss_ref, amean_ref, bmean_ref):
        pid = pl.program_id(0)

        # Outputs are resident across the (arbitrary) batch-reduction axis:
        # zero them on the first grid step.
        @pl.when(pid == 0)
        def _init():
            loss_ref[...] = jnp.zeros_like(loss_ref)
            amean_ref[...] = jnp.zeros_like(amean_ref)
            bmean_ref[...] = jnp.zeros_like(bmean_ref)

        pred = pred_ref[...].astype(jnp.float32)   # (T, C)  batch on sublanes
        rej = rej_ref[...].astype(jnp.float32)     # (T, 1)
        tgt = tgt_ref[...]                         # (T, 1) int32
        t, c = pred.shape

        # p[target] via a masked lane reduce; sum_c(p) via a plain lane reduce.
        col_ids = lax.broadcasted_iota(jnp.int32, (t, c), 1)
        p_tgt = jnp.sum(jnp.where(col_ids == tgt, pred, 0.0),
                        axis=1, keepdims=True)                     # (T, 1)
        p_sum = jnp.sum(pred, axis=1, keepdims=True)               # (T, 1)

        # mean over classes of A = 1 + alpha/2 * (r - signed_onehot * p)
        a_vec = 1.0 + half_alpha * rej - a_scale * (2.0 * p_tgt - p_sum)
        # B = cost * (1 - beta * r)
        b_vec = cost * (1.0 - beta * rej)                           # (T, 1)
        mx = jnp.maximum(a_vec, b_vec)                              # (T, 1)

        if needs_mask:
            # Ragged last tile: zero contributions from rows past the true
            # batch size (Pallas pads partial blocks with undefined data;
            # the select never propagates it).
            row = pid * t + lax.broadcasted_iota(jnp.int32, (t, 1), 0)
            valid = row < batch
            a_vec = jnp.where(valid, a_vec, 0.0)
            b_vec = jnp.where(valid, b_vec, 0.0)
            mx = jnp.where(valid, mx, 0.0)

        loss_ref[...] += jnp.sum(mx, axis=0, keepdims=True)
        amean_ref[...] += jnp.sum(a_vec, axis=0, keepdims=True)
        bmean_ref[...] += jnp.sum(b_vec, axis=0, keepdims=True)

        @pl.when(pid == pl.num_programs(0) - 1)
        def _finalize():
            scale = jnp.float32(inv_b)
            loss_ref[...] *= scale
            amean_ref[...] *= scale
            bmean_ref[...] *= scale

    return kernel


def max_hinge_loss_with_rejection(prediction_out, rejection_out, target,
                                  num_classes=10, cost=0.1, alpha=None,
                                  beta=None, use_softplus=True, tile_b=4096):
    """JAX/Pallas equivalent of MaxHingeLossWithRejection.forward.

    prediction_out: (B, num_classes) float (any float dtype, e.g. bf16/f32)
    rejection_out : (B, 1) float
    target        : (B,) int labels
    Returns (loss_scalar, {'A mean': device_scalar, 'B mean': device_scalar})
    """
    assert 0.0 < cost < 0.5
    alpha = 1.0 if alpha is None else alpha
    beta = (1.0 / (1.0 - 2.0 * cost)) if beta is None else beta
    assert alpha > 0 and beta > 0
    # use_softplus is unused in the reference forward pass (kept for API parity).

    B, C = prediction_out.shape
    assert C == num_classes

    # Native layout: batch on the sublane (second-to-last) axis; predictions
    # are passed straight through with no transpose/copy.
    rej = jnp.reshape(rejection_out, (B, 1))
    tgt = target.astype(jnp.int32).reshape(B, 1)

    # Batch tile: whole batch if it fits (block == full extent is always
    # legal), otherwise a multiple of 8 sublanes.  A (tb, C) float block pads
    # to (tb, 128) lanes in VMEM, so 3 inputs x 2 pipeline buffers x tb*512 B
    # stays well under the 32 MiB scoped-VMEM limit for tb = 4096 (~12.6 MiB).
    if B <= tile_b:
        tb = B
    else:
        tb = max((tile_b // 8) * 8, 8)
    grid = (pl.cdiv(B, tb),)

    kernel = _make_kernel(float(cost), float(alpha), float(beta), C, B, tb)

    out_shapes = (
        jax.ShapeDtypeStruct((1, 1), jnp.float32),  # loss
        jax.ShapeDtypeStruct((1, 1), jnp.float32),  # A mean
        jax.ShapeDtypeStruct((1, 1), jnp.float32),  # B mean
    )
    scalar_out_spec = pl.BlockSpec((1, 1), lambda i: (0, 0))

    loss, a_mean, b_mean = pl.pallas_call(
        kernel,
        grid=grid,
        in_specs=[
            pl.BlockSpec((tb, C), lambda i: (i, 0)),   # predictions (tile, C)
            pl.BlockSpec((tb, 1), lambda i: (i, 0)),   # rejections  (tile, 1)
            pl.BlockSpec((tb, 1), lambda i: (i, 0)),   # targets     (tile, 1)
        ],
        out_specs=(scalar_out_spec, scalar_out_spec, scalar_out_spec),
        out_shape=out_shapes,
        compiler_params=pltpu.CompilerParams(
            dimension_semantics=("arbitrary",),
            vmem_limit_bytes=32 * 1024 * 1024),
    )(prediction_out, rej, tgt)

    # TODO(synk): PyTorch returns loss_dict values via .item() (host floats);
    # we return device scalars to avoid forcing a host sync inside the loss.
    loss_dict = {
        "A mean": a_mean[0, 0],
        "B mean": b_mean[0, 0],
    }
    return loss[0, 0], loss_dict


def _reference(prediction_out, rejection_out, target, num_classes, cost,
               alpha, beta):
    """Pure-JAX reference mirroring the PyTorch forward."""
    onehot = jax.nn.one_hot(target, num_classes, dtype=jnp.float32)
    signed = jnp.where(onehot == 1.0, 1.0, -1.0)
    A = 1.0 + alpha / 2.0 * (rejection_out - signed * prediction_out)
    A = jnp.mean(A, axis=-1)
    Bv = (cost * (1.0 - beta * rejection_out)).reshape(-1)
    mx = jnp.maximum(A, Bv)
    return jnp.mean(mx), jnp.mean(A), jnp.mean(Bv)


if __name__ == "__main__":
    key = jax.random.PRNGKey(0)
    k1, k2, k3 = jax.random.split(key, 3)

    B, num_classes = 8, 10
    cost = 0.1
    alpha = 1.0
    beta = 1.0 / (1.0 - 2.0 * cost)

    prediction_out = jax.random.normal(k1, (B, num_classes), dtype=jnp.float32)
    rejection_out = jax.random.normal(k2, (B, 1), dtype=jnp.float32)
    target = jax.random.randint(k3, (B,), 0, num_classes, dtype=jnp.int32)

    loss, loss_dict = max_hinge_loss_with_rejection(
        prediction_out, rejection_out, target,
        num_classes=num_classes, cost=cost, alpha=alpha, beta=beta)
    loss = jax.block_until_ready(loss)

    # Sanity check against the pure-JAX reference.
    ref_loss, ref_a, ref_b = _reference(prediction_out, rejection_out, target,
                                        num_classes, cost, alpha, beta)
    assert abs(float(loss) - float(ref_loss)) < 1e-5
    assert abs(float(loss_dict["A mean"]) - float(ref_a)) < 1e-5
    assert abs(float(loss_dict["B mean"]) - float(ref_b)) < 1e-5

    print("KERNEL_OK")
</pallas_src>

<mosaic_0001>
module attributes {stable_mosaic.version = 11 : i64} {
  func.func @kernel(%arg0: i32, %arg1: memref<8x10xf32, #tpu.memory_space<vmem>>, %arg2: memref<8x1xf32, #tpu.memory_space<vmem>>, %arg3: memref<8x1xi32, #tpu.memory_space<vmem>>, %arg4: memref<1x1xf32, #tpu.memory_space<vmem>>, %arg5: memref<1x1xf32, #tpu.memory_space<vmem>>, %arg6: memref<1x1xf32, #tpu.memory_space<vmem>>) attributes {dimension_semantics = [#tpu.dimension_semantics<arbitrary>], iteration_bounds = array<i64: 1>, scalar_prefetch = 0 : i64, scratch_operands = 0 : i64, tpu.core_type = #tpu.core_type<tc>, window_params = [{transform_indices = @transform_0, window_bounds = array<i64: 8, 10>}, {transform_indices = @transform_1, window_bounds = array<i64: 8, 1>}, {transform_indices = @transform_2, window_bounds = array<i64: 8, 1>}, {pipeline_mode = #tpu.pipeline_mode<synchronous>, transform_indices = @transform_3, window_bounds = array<i64: 1, 1>}, {pipeline_mode = #tpu.pipeline_mode<synchronous>, transform_indices = @transform_4, window_bounds = array<i64: 1, 1>}, {pipeline_mode = #tpu.pipeline_mode<synchronous>, transform_indices = @transform_5, window_bounds = array<i64: 1, 1>}]} {
    %c0_i32 = arith.constant 0 : i32
    %0 = arith.cmpi eq, %arg0, %c0_i32 : i32
    %1 = arith.extui %0 : i1 to i32
    %c0_i32_0 = arith.constant 0 : i32
    %2 = arith.cmpi ne, %1, %c0_i32_0 : i32
    scf.if %2 {
      %cst_32 = arith.constant 0.000000e+00 : f32
      %50 = vector.broadcast %cst_32 : f32 to vector<1x1xf32>
      %c0_33 = arith.constant 0 : index
      %c0_34 = arith.constant 0 : index
      %51 = vector.load %arg4[%c0_33, %c0_34] : memref<1x1xf32, #tpu.memory_space<vmem>>, vector<1x1xf32>
      tpu.vector_store %arg4[%c0_33, %c0_34], %50 {strides = array<i32>} : memref<1x1xf32, #tpu.memory_space<vmem>>, vector<1x1xf32>,
      %cst_35 = arith.constant 0.000000e+00 : f32
      %52 = vector.broadcast %cst_35 : f32 to vector<1x1xf32>
      %c0_36 = arith.constant 0 : index
      %c0_37 = arith.constant 0 : index
      %53 = vector.load %arg5[%c0_36, %c0_37] : memref<1x1xf32, #tpu.memory_space<vmem>>, vector<1x1xf32>
      tpu.vector_store %arg5[%c0_36, %c0_37], %52 {strides = array<i32>} : memref<1x1xf32, #tpu.memory_space<vmem>>, vector<1x1xf32>,
      %cst_38 = arith.constant 0.000000e+00 : f32
      %54 = vector.broadcast %cst_38 : f32 to vector<1x1xf32>
      %c0_39 = arith.constant 0 : index
      %c0_40 = arith.constant 0 : index
      %55 = vector.load %arg6[%c0_39, %c0_40] : memref<1x1xf32, #tpu.memory_space<vmem>>, vector<1x1xf32>
      tpu.vector_store %arg6[%c0_39, %c0_40], %54 {strides = array<i32>} : memref<1x1xf32, #tpu.memory_space<vmem>>, vector<1x1xf32>,
    } else {
    }
    %c0 = arith.constant 0 : index
    %c0_1 = arith.constant 0 : index
    %3 = vector.load %arg1[%c0, %c0_1] : memref<8x10xf32, #tpu.memory_space<vmem>>, vector<8x10xf32>
    %c0_2 = arith.constant 0 : index
    %c0_3 = arith.constant 0 : index
    %4 = vector.load %arg2[%c0_2, %c0_3] : memref<8x1xf32, #tpu.memory_space<vmem>>, vector<8x1xf32>
    %c0_4 = arith.constant 0 : index
    %c0_5 = arith.constant 0 : index
    %5 = vector.load %arg3[%c0_4, %c0_5] : memref<8x1xi32, #tpu.memory_space<vmem>>, vector<8x1xi32>
    %6 = tpu.iota {dimensions = array<i32: 1>} : vector<8x10xi32>
    %7 = vector.broadcast %5 : vector<8x1xi32> to vector<8x10xi32>
    %8 = arith.cmpi eq, %6, %7 : vector<8x10xi32>
    %cst = arith.constant 0.000000e+00 : f32
    %9 = vector.broadcast %cst : f32 to vector<8x10xf32>
    %10 = arith.select %8, %3, %9 : vector<8x10xi1>, vector<8x10xf32>
    %cst_6 = arith.constant dense<0.000000e+00> : vector<8xf32>
    %11 = vector.multi_reduction <add>, %10, %cst_6 [1] : vector<8x10xf32> to vector<8xf32>
    %12 = vector.shape_cast %11 : vector<8xf32> to vector<8x1xf32>
    %cst_7 = arith.constant dense<0.000000e+00> : vector<8xf32>
    %13 = vector.multi_reduction <add>, %3, %cst_7 [1] : vector<8x10xf32> to vector<8xf32>
    %14 = vector.shape_cast %13 : vector<8xf32> to vector<8x1xf32>
    %cst_8 = arith.constant 5.000000e-01 : f32
    %15 = vector.broadcast %cst_8 : f32 to vector<8x1xf32>
    %16 = arith.mulf %15, %4 : vector<8x1xf32>
    %cst_9 = arith.constant 1.000000e+00 : f32
    %17 = vector.broadcast %cst_9 : f32 to vector<8x1xf32>
    %18 = arith.addf %17, %16 : vector<8x1xf32>
    %cst_10 = arith.constant 2.000000e+00 : f32
    %19 = vector.broadcast %cst_10 : f32 to vector<8x1xf32>
    %20 = arith.mulf %19, %12 : vector<8x1xf32>
    %21 = arith.subf %20, %14 : vector<8x1xf32>
    %cst_11 = arith.constant 5.000000e-02 : f32
    %22 = vector.broadcast %cst_11 : f32 to vector<8x1xf32>
    %23 = arith.mulf %22, %21 : vector<8x1xf32>
    %24 = arith.subf %18, %23 : vector<8x1xf32>
    %cst_12 = arith.constant 1.250000e+00 : f32
    %25 = vector.broadcast %cst_12 : f32 to vector<8x1xf32>
    %26 = arith.mulf %25, %4 : vector<8x1xf32>
    %cst_13 = arith.constant 1.000000e+00 : f32
    %27 = vector.broadcast %cst_13 : f32 to vector<8x1xf32>
    %28 = arith.subf %27, %26 : vector<8x1xf32>
    %cst_14 = arith.constant 1.000000e-01 : f32
    %29 = vector.broadcast %cst_14 : f32 to vector<8x1xf32>
    %30 = arith.mulf %29, %28 : vector<8x1xf32>
    %31 = arith.maximumf %24, %30 : vector<8x1xf32>
    %c0_15 = arith.constant 0 : index
    %c0_16 = arith.constant 0 : index
    %32 = vector.load %arg4[%c0_15, %c0_16] : memref<1x1xf32, #tpu.memory_space<vmem>>, vector<1x1xf32>
    %cst_17 = arith.constant dense<0.000000e+00> : vector<1xf32>
    %33 = vector.multi_reduction <add>, %31, %cst_17 [0] : vector<8x1xf32> to vector<1xf32>
    %34 = vector.shape_cast %33 : vector<1xf32> to vector<1x1xf32>
    %35 = arith.addf %32, %34 : vector<1x1xf32>
    %c0_18 = arith.constant 0 : index
    %c0_19 = arith.constant 0 : index
    %36 = vector.load %arg4[%c0_18, %c0_19] : memref<1x1xf32, #tpu.memory_space<vmem>>, vector<1x1xf32>
    tpu.vector_store %arg4[%c0_18, %c0_19], %35 {strides = array<i32>} : memref<1x1xf32, #tpu.memory_space<vmem>>, vector<1x1xf32>,
    %c0_20 = arith.constant 0 : index
    %c0_21 = arith.constant 0 : index
    %37 = vector.load %arg5[%c0_20, %c0_21] : memref<1x1xf32, #tpu.memory_space<vmem>>, vector<1x1xf32>
    %cst_22 = arith.constant dense<0.000000e+00> : vector<1xf32>
    %38 = vector.multi_reduction <add>, %24, %cst_22 [0] : vector<8x1xf32> to vector<1xf32>
    %39 = vector.shape_cast %38 : vector<1xf32> to vector<1x1xf32>
    %40 = arith.addf %37, %39 : vector<1x1xf32>
    %c0_23 = arith.constant 0 : index
    %c0_24 = arith.constant 0 : index
    %41 = vector.load %arg5[%c0_23, %c0_24] : memref<1x1xf32, #tpu.memory_space<vmem>>, vector<1x1xf32>
    tpu.vector_store %arg5[%c0_23, %c0_24], %40 {strides = array<i32>} : memref<1x1xf32, #tpu.memory_space<vmem>>, vector<1x1xf32>,
    %c0_25 = arith.constant 0 : index
    %c0_26 = arith.constant 0 : index
    %42 = vector.load %arg6[%c0_25, %c0_26] : memref<1x1xf32, #tpu.memory_space<vmem>>, vector<1x1xf32>
    %cst_27 = arith.constant dense<0.000000e+00> : vector<1xf32>
    %43 = vector.multi_reduction <add>, %30, %cst_27 [0] : vector<8x1xf32> to vector<1xf32>
    %44 = vector.shape_cast %43 : vector<1xf32> to vector<1x1xf32>
    %45 = arith.addf %42, %44 : vector<1x1xf32>
    %c0_28 = arith.constant 0 : index
    %c0_29 = arith.constant 0 : index
    %46 = vector.load %arg6[%c0_28, %c0_29] : memref<1x1xf32, #tpu.memory_space<vmem>>, vector<1x1xf32>
    tpu.vector_store %arg6[%c0_28, %c0_29], %45 {strides = array<i32>} : memref<1x1xf32, #tpu.memory_space<vmem>>, vector<1x1xf32>,
    %c0_i32_30 = arith.constant 0 : i32
    %47 = arith.cmpi eq, %arg0, %c0_i32_30 : i32
    %48 = arith.extui %47 : i1 to i32
    %c0_i32_31 = arith.constant 0 : i32
    %49 = arith.cmpi ne, %48, %c0_i32_31 : i32
    scf.if %49 {
      %c0_32 = arith.constant 0 : index
      %c0_33 = arith.constant 0 : index
      %50 = vector.load %arg4[%c0_32, %c0_33] : memref<1x1xf32, #tpu.memory_space<vmem>>, vector<1x1xf32>
      %cst_34 = arith.constant 1.250000e-01 : f32
      %51 = vector.broadcast %cst_34 : f32 to vector<1x1xf32>
      %52 = arith.mulf %50, %51 : vector<1x1xf32>
      %c0_35 = arith.constant 0 : index
      %c0_36 = arith.constant 0 : index
      %53 = vector.load %arg4[%c0_35, %c0_36] : memref<1x1xf32, #tpu.memory_space<vmem>>, vector<1x1xf32>
      tpu.vector_store %arg4[%c0_35, %c0_36], %52 {strides = array<i32>} : memref<1x1xf32, #tpu.memory_space<vmem>>, vector<1x1xf32>,
      %c0_37 = arith.constant 0 : index
      %c0_38 = arith.constant 0 : index
      %54 = vector.load %arg5[%c0_37, %c0_38] : memref<1x1xf32, #tpu.memory_space<vmem>>, vector<1x1xf32>
      %cst_39 = arith.constant 1.250000e-01 : f32
      %55 = vector.broadcast %cst_39 : f32 to vector<1x1xf32>
      %56 = arith.mulf %54, %55 : vector<1x1xf32>
      %c0_40 = arith.constant 0 : index
      %c0_41 = arith.constant 0 : index
      %57 = vector.load %arg5[%c0_40, %c0_41] : memref<1x1xf32, #tpu.memory_space<vmem>>, vector<1x1xf32>
      tpu.vector_store %arg5[%c0_40, %c0_41], %56 {strides = array<i32>} : memref<1x1xf32, #tpu.memory_space<vmem>>, vector<1x1xf32>,
      %c0_42 = arith.constant 0 : index
      %c0_43 = arith.constant 0 : index
      %58 = vector.load %arg6[%c0_42, %c0_43] : memref<1x1xf32, #tpu.memory_space<vmem>>, vector<1x1xf32>
      %cst_44 = arith.constant 1.250000e-01 : f32
      %59 = vector.broadcast %cst_44 : f32 to vector<1x1xf32>
      %60 = arith.mulf %58, %59 : vector<1x1xf32>
      %c0_45 = arith.constant 0 : index
      %c0_46 = arith.constant 0 : index
      %61 = vector.load %arg6[%c0_45, %c0_46] : memref<1x1xf32, #tpu.memory_space<vmem>>, vector<1x1xf32>
      tpu.vector_store %arg6[%c0_45, %c0_46], %60 {strides = array<i32>} : memref<1x1xf32, #tpu.memory_space<vmem>>, vector<1x1xf32>,
    } else {
    }
    return
  }
  func.func @transform_0(%arg0: i32) -> (i32, i32) {
    %c0_i32 = arith.constant 0 : i32
    %c0_i32_0 = arith.constant 0 : i32
    return %arg0, %c0_i32 : i32, i32
  }
  func.func @transform_1(%arg0: i32) -> (i32, i32) {
    %c0_i32 = arith.constant 0 : i32
    %c0_i32_0 = arith.constant 0 : i32
    return %arg0, %c0_i32 : i32, i32
  }
  func.func @transform_2(%arg0: i32) -> (i32, i32) {
    %c0_i32 = arith.constant 0 : i32
    %c0_i32_0 = arith.constant 0 : i32
    return %arg0, %c0_i32 : i32, i32
  }
  func.func @transform_3(%arg0: i32) -> (i32, i32) {
    %c0_i32 = arith.constant 0 : i32
    %c0_i32_0 = arith.constant 0 : i32
    %c0_i32_1 = arith.constant 0 : i32
    return %c0_i32, %c0_i32_0 : i32, i32
  }
  func.func @transform_4(%arg0: i32) -> (i32, i32) {
    %c0_i32 = arith.constant 0 : i32
    %c0_i32_0 = arith.constant 0 : i32
    %c0_i32_1 = arith.constant 0 : i32
    return %c0_i32, %c0_i32_0 : i32, i32
  }
  func.func @transform_5(%arg0: i32) -> (i32, i32) {
    %c0_i32 = arith.constant 0 : i32
    %c0_i32_0 = arith.constant 0 : i32
    %c0_i32_1 = arith.constant 0 : i32
    return %c0_i32, %c0_i32_0 : i32, i32
  }
}

</mosaic_0001>

<llo_original>
// kernel: tpu_custom_call.1
$region0: #{tpu_custom_call.1}
  #allocation0 [shape = 'u32[]', space=smem, size = 0x4, offset = 0x4, fixed_abs, tag = 'smem constant byte address 0x4 - core index']
  #allocation1 [shape = 'u32[144,128]{1,0:T(1,128)}', space=vmem, size = 0x12000, scoped, tag = 'internal scratch']
  %s0 = inlined_call_operand.vmem [shape: f32[8,10], index: 0, kind: input, shape index: {}]
  %s1 = inlined_call_operand.vmem [shape: f32[8,1], index: 1, kind: input, shape index: {}]
  %s2 = inlined_call_operand.vmem [shape: s32[8,1], index: 2, kind: input, shape index: {}]
  %s3 = inlined_call_operand.hbm [shape: f32[1,1], index: 3, kind: output, shape index: {0}]
  %s4 = inlined_call_operand.hbm [shape: f32[1,1], index: 4, kind: output, shape index: {1}]
  %s5 = inlined_call_operand.hbm [shape: f32[1,1], index: 5, kind: output, shape index: {2}]
  %6 = xla_tuple %s3, %s4, %s5
  %s7 = sld [smem:[#allocation0]]
  $region46: #{tpu_custom_call.1} parent=0
    _
  %s9 = ssub.s32 1, %s7
  %s10 = scalar_select 0, %s9, %s7
  $region1: #{tpu_custom_call.1} parent=0
    #allocation2 [shape = 'u8[512]{0}', space=vmem, size = 0x400, scoped, tag = 'output window, operand 0, single buffered']
    #allocation3 [shape = 's32[1]{0}', space=sflag, size = 0x4, scoped, tag = 'scoped memory for tpu_custom_call.1']
    #allocation4 [shape = 'u8[512]{0}', space=vmem, size = 0x400, scoped, tag = 'output window, operand 1, single buffered']
    #allocation5 [shape = 's32[1]{0}', space=sflag, size = 0x4, scoped, tag = 'scoped memory for tpu_custom_call.1']
    #allocation6 [shape = 'u8[512]{0}', space=vmem, size = 0x400, scoped, tag = 'output window, operand 2, single buffered']
    %11 = vsyncpa [#allocation3], 0
    %12 = vsyncpa [#allocation5], 0
    // Predicated region
    $region2: #{tpu_custom_call.1} parent=1 // pred_check
      _
    $region3: #{tpu_custom_call.1} parent=1 // pred_check_branch
      %14 = sbr.rel (0) target = $region5
    $region4: #{tpu_custom_call.1} parent=1 // pred_region
      _
    $region5: #{tpu_custom_call.1} parent=1 // pred_fallthru
      _
    // Predicated region
    $region6: #{tpu_custom_call.1} parent=1 // pred_check
      _
    $region7: #{tpu_custom_call.1} parent=1 // pred_check_branch
      %16 = sbr.rel (0) target = $region9
    $region8: #{tpu_custom_call.1} parent=1 // pred_region
      _
    $region9: #{tpu_custom_call.1} parent=1 // pred_fallthru
      _
    // Predicated region
    $region10: #{tpu_custom_call.1} parent=1 // pred_check
      _
    $region11: #{tpu_custom_call.1} parent=1 // pred_check_branch
      %18 = sbr.rel (0) target = $region13
    $region12: #{tpu_custom_call.1} parent=1 // pred_region
      _
    $region13: #{tpu_custom_call.1} parent=1 // pred_fallthru
      _
    %p19 = scmp.eq.s32.totalorder 0, 0
    // Predicated region
    $region14: #{tpu_custom_call.1} parent=1 // pred_check
      %p20 = pneg %p19
    $region15: #{tpu_custom_call.1} parent=1 // pred_check_branch
      %22 = sbr.rel (%p20) target = $region17
    $region16: #{tpu_custom_call.1} parent=1 // pred_region
      %vm23 = vcmask 0
      %24 = vst.msk [vmem:[#allocation2] sm:$0x1] %vm23, 0.0
      %25 = vst.msk [vmem:[#allocation4] sm:$0x1] %vm23, 0.0
      %26 = vst.msk [vmem:[#allocation6] sm:$0x1] %vm23, 0.0
    $region17: #{tpu_custom_call.1} parent=1 // pred_fallthru
      _
    %v27 = vld [vmem:[%s0] sm:$0xff]
    %v28 = vld [vmem:[%s1] sm:$0xff]
    %v29 = vld [vmem:[%s2] sm:$0xff]
    %v30 = vlaneseq
    %v31 = vand.u32 %v30, 127
    %32 = vset.pattern.permute.xlu0 0
    %33 = vperm.xlu0 %32, %v29
    %v34 = vpop.permute.xlu0 %33
    %vm35 = vcmp.eq.s32.totalorder %v31, %v34
    %v36 = vsel %vm35, %v27, 0.0
    %vm37 = vcmask 80896
    %v38 = vsel %vm37, %v36, 0.0
    %39 = vadd.xlane.f32.xlu0 %v38
    %v40 = vpop.xlane.xlu0 %39
    %v41 = vsel %vm37, %v27, 0.0
    %42 = vadd.xlane.f32.xlu0 %v41
    %v43 = vpop.xlane.xlu0 %42
    %v44 = vmul.f32 %v28, 0.5
    %v45 = vadd.f32 %v44, 1.0
    %v46 = vmul.f32 %v40, 2.0
    %v47 = vsub.f32 %v46, %v43
    %v48 = vmul.f32 %v47, 0.05
    %v49 = vsub.f32 %v45, %v48
    %v50 = vmul.f32 %v28, 1.25
    %v51 = vsub.f32 1.0, %v50
    %v52 = vmul.f32 %v51, 0.1
    %v53 = vmax.f32 %v49, %v52
    %v54 = vld [vmem:[#allocation2] sm:$0x1]
    %vm55 = vcmask 7168
    %v56 = vsel %vm55, %v53, 0.0
    %v57 = vrot.slane %v56, 4
    %v58 = vadd.f32 %v56, %v57
    %v59 = vrot.slane %v58, 2
    %v60 = vadd.f32 %v58, %v59
    %v61 = vrot.slane %v60, 1
    %v62 = vadd.f32 %v60, %v61
    %v63 = vadd.f32 %v54, %v62
    %vm64 = vcmask 0
    %65 = vst.msk [vmem:[#allocation2] sm:$0x1] %vm64, %v63
    %v66 = vld [vmem:[#allocation4] sm:$0x1]
    %v67 = vsel %vm55, %v49, 0.0
    %v68 = vrot.slane %v67, 4
    %v69 = vadd.f32 %v67, %v68
    %v70 = vrot.slane %v69, 2
    %v71 = vadd.f32 %v69, %v70
    %v72 = vrot.slane %v71, 1
    %v73 = vadd.f32 %v71, %v72
    %v74 = vadd.f32 %v66, %v73
    %75 = vst.msk [vmem:[#allocation4] sm:$0x1] %vm64, %v74
    %v76 = vld [vmem:[#allocation6] sm:$0x1]
    %v77 = vsel %vm55, %v52, 0.0
    %v78 = vrot.slane %v77, 4
    %v79 = vadd.f32 %v77, %v78
    %v80 = vrot.slane %v79, 2
    %v81 = vadd.f32 %v79, %v80
    %v82 = vrot.slane %v81, 1
    %v83 = vadd.f32 %v81, %v82
    %v84 = vadd.f32 %v76, %v83
    %85 = vst.msk [vmem:[#allocation6] sm:$0x1] %vm64, %v84
    // Predicated region
    $region18: #{tpu_custom_call.1} parent=1 // pred_check
      %p86 = pneg %p19
    $region19: #{tpu_custom_call.1} parent=1 // pred_check_branch
      %88 = sbr.rel (%p86) target = $region21
    $region20: #{tpu_custom_call.1} parent=1 // pred_region
      %v89 = vld [vmem:[#allocation2] sm:$0x1]
      %v90 = vmul.f32 %v89, 0.125
      %91 = vst.msk [vmem:[#allocation2] sm:$0x1] %vm64, %v90
      %v92 = vld [vmem:[#allocation4] sm:$0x1]
      %v93 = vmul.f32 %v92, 0.125
      %94 = vst.msk [vmem:[#allocation4] sm:$0x1] %vm64, %v93
      %v95 = vld [vmem:[#allocation6] sm:$0x1]
      %v96 = vmul.f32 %v95, 0.125
      %97 = vst.msk [vmem:[#allocation6] sm:$0x1] %vm64, %v96
    $region21: #{tpu_custom_call.1} parent=1 // pred_fallthru
      _
    // Predicated region
    $region22: #{tpu_custom_call.1} parent=1 // pred_check
      _
    $region23: #{tpu_custom_call.1} parent=1 // pred_check_branch
      %99 = sbr.rel (0) target = $region25
    $region24: #{tpu_custom_call.1} parent=1 // pred_region
      %s101 = ssub.s32 16, 16
      %102 = vsyncadd [#allocation3], %s101
      %s104 = sshll.u32 [#allocation2], 4
      %s105 = int_to_ptr.vmem [resolvable:$true] %s104
      %107 = dma.vmem_to_hbm [thread:$0]  %s105, 16, %s3, [#allocation3]
    $region25: #{tpu_custom_call.1} parent=1 // pred_fallthru
      _
    // Predicated region
    $region26: #{tpu_custom_call.1} parent=1 // pred_check
      _
    $region27: #{tpu_custom_call.1} parent=1 // pred_check_branch
      %109 = sbr.rel (0) target = $region29
    $region28: #{tpu_custom_call.1} parent=1 // pred_region
      %s111 = ssub.s32 16, 16
      %112 = vsyncadd [#allocation5], %s111
      %s114 = sshll.u32 [#allocation4], 4
      %s115 = int_to_ptr.vmem [resolvable:$true] %s114
      %117 = dma.vmem_to_hbm [thread:$0]  %s115, 16, %s4, [#allocation5]
    $region29: #{tpu_custom_call.1} parent=1 // pred_fallthru
      _
    // Predicated region
    $region30: #{tpu_custom_call.1} parent=1 // pred_check
      _
    $region31: #{tpu_custom_call.1} parent=1 // pred_check_branch
      %119 = sbr.rel (0) target = $region33
    $region32: #{tpu_custom_call.1} parent=1 // pred_region
      %s121 = ssub.s32 16, 16
      %122 = vsyncadd [#allocation5], %s121
      %s124 = sshll.u32 [#allocation6], 4
      %s125 = int_to_ptr.vmem [resolvable:$true] %s124
      %127 = dma.vmem_to_hbm [thread:$0]  %s125, 16, %s5, [#allocation5]
    $region33: #{tpu_custom_call.1} parent=1 // pred_fallthru
      _
    // Predicated region
    $region34: #{tpu_custom_call.1} parent=1 // pred_check
      _
    $region35: #{tpu_custom_call.1} parent=1 // pred_check_branch
      %129 = sbr.rel (0) target = $region37
    $region36: #{tpu_custom_call.1} parent=1 // pred_region
      %130 = dma.done [#allocation3], 16
    $region37: #{tpu_custom_call.1} parent=1 // pred_fallthru
      _
    // Predicated region
    $region38: #{tpu_custom_call.1} parent=1 // pred_check
      _
    $region39: #{tpu_custom_call.1} parent=1 // pred_check_branch
      %132 = sbr.rel (0) target = $region41
    $region40: #{tpu_custom_call.1} parent=1 // pred_region
      %133 = dma.done [#allocation5], 16
    $region41: #{tpu_custom_call.1} parent=1 // pred_fallthru
      _
    // Predicated region
    $region42: #{tpu_custom_call.1} parent=1 // pred_check
      _
    $region43: #{tpu_custom_call.1} parent=1 // pred_check_branch
      %135 = sbr.rel (0) target = $region45
    $region44: #{tpu_custom_call.1} parent=1 // pred_region
      %136 = dma.done [#allocation5], 16
    $region45: #{tpu_custom_call.1} parent=1 // pred_fallthru
      _
    %137 = vsyncpa [#allocation3], 1
    %138 = vsyncpa [#allocation5], 1

</llo_original>
